<compile_context>
chip_gen: v7x
topology: tpu7x:2x2x1
jax: 0.10.0
libtpu: 0.0.40
codegen_flags: <defaults>
</compile_context>

<pallas_src>
import functools

import jax
import jax.numpy as jnp
from jax.experimental import pallas as pl
from jax.experimental.pallas import tpu as pltpu

_LANES = 128
_SUBLANES = 8
_TILE = _LANES * _SUBLANES  # 1024 f32 elements = one fully packed vreg per 1024


def _lognormal_schedule_kernel(z_ref, out_ref, *, mean, std):
    # One fused pass over a sublane/lane-dense (rows, 128) tile:
    # VPU FMA (z * std + mean) feeding the EUP exp, full-lane unmasked stores.
    out_ref[...] = jnp.exp(z_ref[...] * std + mean)


def lognormal_schedule(data, key, *, sigma_max: float = 80.0,
                       mean: float = -1.2, std: float = 1.2):
    """JAX/Pallas equivalent of LogNormalSchedule(sigma_max, mean, std).forward(data).

    `key` is a jax.random key (replaces torch's global RNG state).
    Returns sigma with shape [B, 1, ..., 1] broadcastable against `data`.
    """
    del sigma_max  # stored but unused in the PyTorch forward
    b = data.shape[0]
    # Pad B up to a multiple of 8*128 so the kernel sees fully packed vregs.
    rows = pl.cdiv(b, _TILE) * _SUBLANES
    n = rows * _LANES

    # Standard-normal draw generated on-device by XLA (bit-reproducible w.r.t.
    # the JAX key).  NOTE: padded elements beyond B still consume RNG output,
    # so per-element draws for a given key depend on the padded width.
    z = jax.random.normal(key, (rows, _LANES), dtype=jnp.float32)

    out = pl.pallas_call(
        functools.partial(_lognormal_schedule_kernel,
                          mean=float(mean), std=float(std)),
        out_shape=jax.ShapeDtypeStruct((rows, _LANES), jnp.float32),
        in_specs=[pl.BlockSpec(memory_space=pltpu.MemorySpace.VMEM)],
        out_specs=pl.BlockSpec(memory_space=pltpu.MemorySpace.VMEM),
        cost_estimate=pl.CostEstimate(
            flops=2 * n, transcendentals=n, bytes_accessed=8 * n),
    )(z)

    # [B, 1, ..., 1], broadcastable against `data` exactly as in the torch module.
    return out.reshape(-1)[:b].reshape((b,) + (1,) * (data.ndim - 1))


if __name__ == "__main__":
    key = jax.random.PRNGKey(0)
    k_data, k_sigma, k_sigma_big = jax.random.split(key, 3)

    # Small NCHW-style example input; only batch size / ndim matter to the schedule.
    data = jax.random.normal(k_data, (2, 4, 16, 16), dtype=jnp.float32)

    sigma = jax.block_until_ready(
        lognormal_schedule(data, k_sigma, sigma_max=80.0))

    assert sigma.shape == (2, 1, 1, 1), sigma.shape
    assert sigma.dtype == jnp.float32, sigma.dtype
    assert bool(jnp.all(jnp.isfinite(sigma))), sigma
    assert bool(jnp.all(sigma > 0.0)), "sigma = exp(...) must be positive"

    # Exact check against the reference formula with the same draw.
    z_ref = jax.random.normal(k_sigma, (8, 128), dtype=jnp.float32)
    sigma_ref = jnp.exp(z_ref.reshape(-1)[:2] * 1.2 + (-1.2)).reshape(2, 1, 1, 1)
    assert bool(jnp.allclose(sigma, sigma_ref, rtol=1e-6, atol=1e-6)), (sigma, sigma_ref)

    # Statistical validation at a realistic batch: log(sigma) ~ N(-1.2, 1.2).
    big = jnp.zeros((4096, 3), jnp.float32)        # only shape[0] / ndim are consumed
    sigma_big = jax.block_until_ready(lognormal_schedule(big, k_sigma_big))
    assert sigma_big.shape == (4096, 1), sigma_big.shape
    ls = jnp.log(sigma_big).ravel()
    assert abs(float(ls.mean()) - (-1.2)) < 0.15, float(ls.mean())
    assert abs(float(ls.std()) - 1.2) < 0.15, float(ls.std())

    print("KERNEL_OK")
</pallas_src>

<mosaic_0001>
module attributes {stable_mosaic.version = 11 : i64} {
  func.func @_lognormal_schedule_kernel(%arg0: memref<8x128xf32, #tpu.memory_space<vmem>>, %arg1: memref<8x128xf32, #tpu.memory_space<vmem>>) attributes {dimension_semantics = [], scalar_prefetch = 0 : i64, scratch_operands = 0 : i64, tpu.core_type = #tpu.core_type<tc>} {
    %c0 = arith.constant 0 : index
    %c0_0 = arith.constant 0 : index
    %0 = vector.load %arg0[%c0, %c0_0] : memref<8x128xf32, #tpu.memory_space<vmem>>, vector<8x128xf32>
    %cst = arith.constant 1.200000e+00 : f32
    %1 = vector.broadcast %cst : f32 to vector<8x128xf32>
    %2 = arith.mulf %0, %1 : vector<8x128xf32>
    %cst_1 = arith.constant -1.200000e+00 : f32
    %3 = vector.broadcast %cst_1 : f32 to vector<8x128xf32>
    %4 = arith.addf %2, %3 : vector<8x128xf32>
    %5 = math.exp %4 : vector<8x128xf32>
    %c0_2 = arith.constant 0 : index
    %c0_3 = arith.constant 0 : index
    %6 = vector.load %arg1[%c0_2, %c0_3] : memref<8x128xf32, #tpu.memory_space<vmem>>, vector<8x128xf32>
    tpu.vector_store %arg1[%c0_2, %c0_3], %5 {strides = array<i32>} : memref<8x128xf32, #tpu.memory_space<vmem>>, vector<8x128xf32>,
    return
  }
}

</mosaic_0001>

<llo_original>
// kernel: tpu_custom_call.1
$region0: #{tpu_custom_call.1}
  #allocation0 [shape = 'u32[]', space=smem, size = 0x4, offset = 0x4, fixed_abs, tag = 'smem constant byte address 0x4 - core index']
  #allocation1 [shape = 'u32[144,128]{1,0:T(1,128)}', space=vmem, size = 0x12000, scoped, tag = 'internal scratch']
  %s0 = inlined_call_operand.hbm [shape: f32[8,128], index: 0, kind: input, shape index: {}]
  %s1 = inlined_call_operand.hbm [shape: f32[8,128], index: 1, kind: output, shape index: {}]
  %s2 = sld [smem:[#allocation0]]
  $region18: #{tpu_custom_call.1} parent=0
    _
  %s4 = ssub.s32 1, %s2
  %s5 = scalar_select 0, %s4, %s2
  $region1: #{tpu_custom_call.1} parent=0
    #allocation2 [shape = 'u8[4096]{0}', space=vmem, size = 0x1000, scoped, tag = 'input window, operand 0, single buffered']
    #allocation3 [shape = 's32[1]{0}', space=sflag, size = 0x4, scoped, tag = 'scoped memory for tpu_custom_call.1']
    #allocation4 [shape = 's32[1]{0}', space=sflag, size = 0x4, scoped, tag = 'scoped memory for tpu_custom_call.1']
    #allocation5 [shape = 'u8[4096]{0}', space=vmem, size = 0x1000, scoped, tag = 'output window, operand 0, single buffered']
    %6 = vsyncpa [#allocation3], 0
    %7 = vsyncpa [#allocation4], 0
    // Predicated region
    $region2: #{tpu_custom_call.1} parent=1 // pred_check
      _
    $region3: #{tpu_custom_call.1} parent=1 // pred_check_branch
      %9 = sbr.rel (0) target = $region5
    $region4: #{tpu_custom_call.1} parent=1 // pred_region
      %s11 = ssub.s32 128, 128
      %12 = vsyncadd [#allocation3], %s11
      %s14 = sshll.u32 [#allocation2], 4
      %s15 = int_to_ptr.vmem [resolvable:$true] %s14
      %17 = dma.hbm_to_vmem [thread:$0]  %s0, 128, %s15, [#allocation3]
    $region5: #{tpu_custom_call.1} parent=1 // pred_fallthru
      _
    // Predicated region
    $region6: #{tpu_custom_call.1} parent=1 // pred_check
      _
    $region7: #{tpu_custom_call.1} parent=1 // pred_check_branch
      %19 = sbr.rel (0) target = $region9
    $region8: #{tpu_custom_call.1} parent=1 // pred_region
      %20 = dma.done [#allocation3], 128
    $region9: #{tpu_custom_call.1} parent=1 // pred_fallthru
      _
    %v21 = vld [vmem:[#allocation2] sm:$0xff]
    %v22 = vmul.f32 %v21, 1.2
    %v23 = vadd.f32 %v22, -1.2
    %v24 = vmul.f32 %v23, 1.442695
    %v25 = vpow.pop %v24
    %26 = vst [vmem:[#allocation5] sm:$0xff] %v25
    // Predicated region
    $region10: #{tpu_custom_call.1} parent=1 // pred_check
      _
    $region11: #{tpu_custom_call.1} parent=1 // pred_check_branch
      %28 = sbr.rel (0) target = $region13
    $region12: #{tpu_custom_call.1} parent=1 // pred_region
      %s30 = ssub.s32 128, 128
      %31 = vsyncadd [#allocation4], %s30
      %s33 = sshll.u32 [#allocation5], 4
      %s34 = int_to_ptr.vmem [resolvable:$true] %s33
      %36 = dma.vmem_to_hbm [thread:$0]  %s34, 128, %s1, [#allocation4]
    $region13: #{tpu_custom_call.1} parent=1 // pred_fallthru
      _
    // Predicated region
    $region14: #{tpu_custom_call.1} parent=1 // pred_check
      _
    $region15: #{tpu_custom_call.1} parent=1 // pred_check_branch
      %38 = sbr.rel (0) target = $region17
    $region16: #{tpu_custom_call.1} parent=1 // pred_region
      %39 = dma.done [#allocation4], 128
    $region17: #{tpu_custom_call.1} parent=1 // pred_fallthru
      _
    %40 = vsyncpa [#allocation3], 1
    %41 = vsyncpa [#allocation4], 1

</llo_original>
